<compile_context>
chip_gen: v7x
topology: tpu7x:2x2x1
jax: 0.10.0
libtpu: 0.0.40
codegen_flags: <defaults>
</compile_context>

<pallas_src>
import functools

import jax
import jax.numpy as jnp
from jax.experimental import pallas as pl
from jax.experimental.pallas import tpu as pltpu

LEAKY_SLOPE = 0.2
EPS = 1e-5                           # torch InstanceNorm2d default eps
FB = 64                              # filter_base
VMEM_LIMIT = 32 * 1024 * 1024        # safe scoped limit on v5e / v6e / v7x
FUSED_VMEM_BUDGET = 24 * 1024 * 1024  # resident-tile budget for the fused path


def _round_up(x, m):
    return ((x + m - 1) // m) * m


# ---------------------------------------------------------------------------
# Pallas kernels
# ---------------------------------------------------------------------------
def _conv_bias_act_kernel(p_ref, w_ref, b_ref, o_ref, *, act):
    """o = act(p @ w + b); whole K contraction in one step, direct store."""
    out = jnp.dot(p_ref[...], w_ref[...], preferred_element_type=jnp.float32)
    out = out + b_ref[...]
    if act == "leaky":
        out = jnp.where(out >= 0, out, LEAKY_SLOPE * out)
    o_ref[...] = out.astype(o_ref.dtype)


def _conv_in_act_kernel(p_ref, w_ref, o_ref, *, batch, hw):
    """o = LeakyReLU(InstanceNorm(p @ w)), fused epilogue; full M, K resident.

    Patch rows are ordered (b, oh, ow) with batch outermost, so instance
    statistics are per-(batch, channel) reductions over contiguous row blocks
    of length hw.  The conv bias is omitted: InstanceNorm(affine=False)
    cancels it exactly.  Masked (not sliced) reductions keep every op on
    full, aligned tiles and allow one unmasked lane-dense store.
    """
    acc = jnp.dot(p_ref[...], w_ref[...], preferred_element_type=jnp.float32)
    m = acc.shape[0]
    rows = jax.lax.broadcasted_iota(jnp.int32, (m, 1), 0)
    inv_hw = jnp.float32(1.0 / hw)
    out = jnp.zeros_like(acc)
    for b in range(batch):                        # static unroll (small batch)
        mask = (rows >= b * hw) & (rows < (b + 1) * hw)
        xb = jnp.where(mask, acc, 0.0)
        mean = jnp.sum(xb, axis=0, keepdims=True) * inv_hw
        xc = acc - mean
        var = jnp.sum(jnp.where(mask, xc * xc, 0.0), axis=0,
                      keepdims=True) * inv_hw
        y = xc * jax.lax.rsqrt(var + EPS)
        y = jnp.where(y >= 0, y, LEAKY_SLOPE * y)
        out = jnp.where(mask, y, out)
    o_ref[...] = out.astype(o_ref.dtype)


def _instnorm_act_kernel(x_ref, o_ref):
    """Standalone InstanceNorm + LeakyReLU (fallback path only)."""
    x = x_ref[...].astype(jnp.float32)            # (1, HW, C)
    mean = jnp.mean(x, axis=1, keepdims=True)
    xc = x - mean
    var = jnp.mean(xc * xc, axis=1, keepdims=True)
    y = xc * jax.lax.rsqrt(var + EPS)
    y = jnp.where(y >= 0, y, LEAKY_SLOPE * y)
    o_ref[...] = y.astype(o_ref.dtype)


# ---------------------------------------------------------------------------
# Tile selection
# ---------------------------------------------------------------------------
def _pick_tn(npad, k):
    """Lane-dense N tile; split N (>=2 grid steps) when Npad >= 256 so v7x
    megacore can use both TensorCores; cap the bf16 weight tile at ~4 MiB."""
    if npad <= 128:
        return npad
    tn = npad // 2 if (npad // 2) % 128 == 0 else 128
    while tn > 128 and k * tn * 2 > (4 << 20):
        tn //= 2
    return tn


def _pick_tm(m, k, cap_bytes=4 << 20, tm_max=2048):
    """Largest M tile (<= tm_max, patch tile <= cap_bytes) that divides M."""
    cap = min(tm_max, max(8, cap_bytes // (k * 2)))
    if m <= cap:
        return m
    cap -= cap % 8
    for d in range(cap, 7, -8):
        if m % d == 0:
            return d
    return m


# ---------------------------------------------------------------------------
# pallas_call wrappers
# ---------------------------------------------------------------------------
def conv_bias_act(patches, wf, bias2d, act, out_dtype):
    """act(patches @ wf + bias).  patches/wf bf16, bias f32, f32 accumulate."""
    m, k = patches.shape
    npad = wf.shape[1]
    tm = _pick_tm(m, k)
    tn = _pick_tn(npad, k)
    cost = pl.CostEstimate(
        flops=2 * m * npad * k, transcendentals=0,
        bytes_accessed=m * k * 2 + k * npad * 2 + npad * 4
        + m * npad * jnp.dtype(out_dtype).itemsize)
    return pl.pallas_call(
        functools.partial(_conv_bias_act_kernel, act=act),
        out_shape=jax.ShapeDtypeStruct((m, npad), out_dtype),
        grid_spec=pltpu.PrefetchScalarGridSpec(
            num_scalar_prefetch=0,
            grid=(m // tm, npad // tn),
            in_specs=[
                pl.BlockSpec((tm, k), lambda i, j: (i, 0)),
                pl.BlockSpec((k, tn), lambda i, j: (0, j)),
                pl.BlockSpec((1, tn), lambda i, j: (0, j)),
            ],
            out_specs=pl.BlockSpec((tm, tn), lambda i, j: (i, j)),
        ),
        compiler_params=pltpu.CompilerParams(
            dimension_semantics=("parallel", "parallel"),
            vmem_limit_bytes=VMEM_LIMIT,
        ),
        cost_estimate=cost,
    )(patches, wf, bias2d)


def conv_instnorm_act(patches, wf, batch, hw):
    """LeakyReLU(InstanceNorm(patches @ wf)) with the norm fused in-kernel."""
    m, k = patches.shape
    npad = wf.shape[1]
    tn = _pick_tn(npad, k)
    cost = pl.CostEstimate(
        flops=2 * m * npad * k + 10 * m * npad * batch,
        transcendentals=batch * npad,
        bytes_accessed=m * k * 2 + k * npad * 2 + m * npad * 2)
    return pl.pallas_call(
        functools.partial(_conv_in_act_kernel, batch=batch, hw=hw),
        out_shape=jax.ShapeDtypeStruct((m, npad), jnp.bfloat16),
        grid_spec=pltpu.PrefetchScalarGridSpec(
            num_scalar_prefetch=0,
            grid=(npad // tn,),
            in_specs=[
                pl.BlockSpec((m, k), lambda j: (0, 0)),
                pl.BlockSpec((k, tn), lambda j: (0, j)),
            ],
            out_specs=pl.BlockSpec((m, tn), lambda j: (0, j)),
        ),
        compiler_params=pltpu.CompilerParams(
            dimension_semantics=("parallel",),
            vmem_limit_bytes=VMEM_LIMIT,
        ),
        cost_estimate=cost,
    )(patches, wf)


def instnorm_act_nhwc(x):
    """Fallback InstanceNorm2d(affine=False) + LeakyReLU over (B,H,W,C)."""
    b, h, w, c = x.shape
    x3 = x.reshape(b, h * w, c)
    y = pl.pallas_call(
        _instnorm_act_kernel,
        out_shape=jax.ShapeDtypeStruct((b, h * w, c), jnp.bfloat16),
        grid_spec=pltpu.PrefetchScalarGridSpec(
            num_scalar_prefetch=0,
            grid=(b,),
            in_specs=[pl.BlockSpec((1, h * w, c), lambda i: (i, 0, 0))],
            out_specs=pl.BlockSpec((1, h * w, c), lambda i: (i, 0, 0)),
        ),
        compiler_params=pltpu.CompilerParams(
            dimension_semantics=("parallel",),
            vmem_limit_bytes=VMEM_LIMIT,
        ),
    )(x3)
    return y.reshape(b, h, w, c)


# ---------------------------------------------------------------------------
# Conv2d(k=4, s=2, p=1) glue: space-to-depth im2col (4 contiguous tap slices)
# ---------------------------------------------------------------------------
# TODO(synk): the tap gather stays as XLA glue; moving it in-kernel needs
# element-offset windows (overlapping taps) which BlockSpec can't express.
def _im2col_s2d(x):
    """Returns (B*OH*OW, 16*C) patches, feature order (kh_hi,kw_hi,kh_lo,kw_lo,c),
    the same order prep_params() uses for the weight rows."""
    b, h, w, c = x.shape
    oh, ow = h // 2, w // 2
    xp = jnp.pad(x, ((0, 0), (1, 1), (1, 1), (0, 0)))        # (B, H+2, W+2, C)
    xs = xp.reshape(b, oh + 1, 2, ow + 1, 2, c)
    xs = xs.transpose(0, 1, 3, 2, 4, 5).reshape(b, oh + 1, ow + 1, 4 * c)
    patches = jnp.concatenate(
        [xs[:, 0:oh, 0:ow], xs[:, 0:oh, 1:ow + 1],
         xs[:, 1:oh + 1, 0:ow], xs[:, 1:oh + 1, 1:ow + 1]], axis=-1)
    return patches.reshape(b * oh * ow, 16 * c), oh, ow


def conv_block(x, layer, *, n_out, fused_norm):
    """One encoder block on NHWC bf16 activations.

    fused_norm=False: Conv(+bias) -> LeakyReLU                  (block 1)
    fused_norm=True : Conv -> InstanceNorm2d -> LeakyReLU       (blocks 2..7)
    """
    b, h, w, c = x.shape
    wf = layer["w"]
    npad = wf.shape[1]
    cin_exp = wf.shape[0] // 16
    if c < cin_exp:                 # lane-dense K (layer 1: 3 -> 8 channels)
        x = jnp.pad(x, ((0, 0), (0, 0), (0, 0), (0, cin_exp - c)))
    patches, oh, ow = _im2col_s2d(x)
    m, k = patches.shape
    if fused_norm:
        tn = _pick_tn(npad, k)
        resident = 2 * (m * k * 2 + k * tn * 2 + m * tn * 2)
        if resident <= FUSED_VMEM_BUDGET:
            out = conv_instnorm_act(patches, wf, batch=b, hw=oh * ow)
        else:
            # TODO(synk): large-M fallback keeps conv and norm as two kernels.
            zero_b = jnp.zeros((1, npad), jnp.float32)
            out = conv_bias_act(patches, wf, zero_b, act="none",
                                out_dtype=jnp.float32)
            out = instnorm_act_nhwc(out.reshape(b, oh, ow, npad))
            out = out.reshape(m, npad)
    else:
        out = conv_bias_act(patches, wf, layer["b"], act="leaky",
                            out_dtype=jnp.bfloat16)
    out = out.reshape(b, oh, ow, npad)
    if npad != n_out:
        out = out[..., :n_out]
    return out


# ---------------------------------------------------------------------------
# Parameters: raw (torch layout) + one-time kernel-layout prep
# ---------------------------------------------------------------------------
def init_encoder_raw(key, inp_channels=3, filter_base=FB, scale=0.05):
    """Random params in the PyTorch Conv2d layout: w (Cout,Cin,4,4), b (Cout,)."""
    chans = [inp_channels, filter_base, 2 * filter_base, 4 * filter_base,
             8 * filter_base, 8 * filter_base, 4 * filter_base, filter_base]
    keys = jax.random.split(key, 7)
    params = []
    for i in range(7):
        kw, kb = jax.random.split(keys[i])
        params.append({
            "w": scale * jax.random.normal(
                kw, (chans[i + 1], chans[i], 4, 4), jnp.float32),
            "b": scale * jax.random.normal(kb, (chans[i + 1],), jnp.float32),
        })
    return params


def prep_params(raw_params):
    """One-time layout prep, hoisted out of the jitted forward.

    torch (Cout,Cin,4,4) -> (16*Cin_pad, Npad) bf16 rows in _im2col_s2d's
    feature order; Cout zero-padded to a multiple of 128 for lane-dense
    stores.  The bias is kept (padded, f32) only for the first block; blocks
    followed by InstanceNorm2d(affine=False) have their bias cancelled.
    """
    prepped, n_outs = [], []
    for i, p in enumerate(raw_params):
        w = p["w"]
        cout, cin = w.shape[0], w.shape[1]
        cin_pad = _round_up(cin, 8)          # 16*cin_pad is a multiple of 128
        npad = _round_up(cout, 128)
        if cin_pad != cin:
            w = jnp.pad(w, ((0, 0), (0, cin_pad - cin), (0, 0), (0, 0)))
        # (co, c, kh, kw) -> (kh_hi, kw_hi, kh_lo, kw_lo, c, co)
        wf = w.reshape(cout, cin_pad, 2, 2, 2, 2).transpose(2, 4, 3, 5, 1, 0)
        wf = wf.reshape(16 * cin_pad, cout)
        if npad != cout:
            wf = jnp.pad(wf, ((0, 0), (0, npad - cout)))
        entry = {"w": wf.astype(jnp.bfloat16)}
        if i == 0:
            bias = p["b"]
            if npad != cout:
                bias = jnp.pad(bias, ((0, npad - cout),))
            entry["b"] = bias.reshape(1, npad).astype(jnp.float32)
        prepped.append(entry)
        n_outs.append(cout)
    return prepped, tuple(n_outs)


@functools.partial(jax.jit, static_argnums=2)
def encoder_forward(params, image_nchw, n_outs):
    x = jnp.transpose(image_nchw, (0, 2, 3, 1)).astype(jnp.bfloat16)  # NHWC
    x = conv_block(x, params[0], n_out=n_outs[0], fused_norm=False)
    for i in range(1, 7):
        # Note: the last block normalizes a 1x1 spatial map (var=0 -> zeros),
        # the same degenerate InstanceNorm math the reference architecture has.
        x = conv_block(x, params[i], n_out=n_outs[i], fused_norm=True)
    return jnp.transpose(x, (0, 3, 1, 2)).astype(jnp.float32)         # NCHW


# ---------------------------------------------------------------------------
# Pure-JAX references (for the unit checks)
# ---------------------------------------------------------------------------
def _ref_conv(x, w, b):
    out = jax.lax.conv_general_dilated(
        x, jnp.transpose(w, (2, 3, 1, 0)),
        window_strides=(2, 2), padding=((1, 1), (1, 1)),
        dimension_numbers=("NHWC", "HWIO", "NHWC"))
    return out + b.reshape(1, 1, 1, -1)


def _leaky(x):
    return jnp.where(x >= 0, x, LEAKY_SLOPE * x)


def _ref_instnorm_leaky(x):
    mean = jnp.mean(x, axis=(1, 2), keepdims=True)
    var = jnp.mean((x - mean) ** 2, axis=(1, 2), keepdims=True)
    return _leaky((x - mean) * jax.lax.rsqrt(var + EPS))


# ---------------------------------------------------------------------------
if __name__ == "__main__":
    key = jax.random.PRNGKey(0)
    kp, ki, kt = jax.random.split(key, 3)
    k1, k2, k3, k4 = jax.random.split(kt, 4)

    # --- unit check 1: Conv + bias + LeakyReLU block (layer-1 style) --------
    raw1 = [{"w": 0.05 * jax.random.normal(k1, (64, 3, 4, 4), jnp.float32),
             "b": 0.05 * jax.random.normal(k2, (64,), jnp.float32)}]
    prep1, n1 = prep_params(raw1)
    x1 = jax.random.normal(k3, (2, 3, 16, 16), jnp.float32)
    x1q = x1.astype(jnp.bfloat16).astype(jnp.float32)
    w1q = raw1[0]["w"].astype(jnp.bfloat16).astype(jnp.float32)
    got1 = conv_block(jnp.transpose(x1, (0, 2, 3, 1)).astype(jnp.bfloat16),
                      prep1[0], n_out=n1[0], fused_norm=False)
    ref1 = _leaky(_ref_conv(jnp.transpose(x1q, (0, 2, 3, 1)), w1q, raw1[0]["b"]))
    err1 = float(jnp.max(jnp.abs(got1.astype(jnp.float32) - ref1)))
    assert err1 < 3e-2, f"conv+bias+leaky mismatch: {err1}"

    # --- unit check 2: fused Conv + InstanceNorm + LeakyReLU block ----------
    raw2 = [{"w": 0.05 * jax.random.normal(k4, (96, 16, 4, 4), jnp.float32),
             "b": 0.05 * jax.random.normal(k2, (96,), jnp.float32)}]
    prep2, n2 = prep_params(raw2)
    x2 = jax.random.normal(k3, (2, 16, 16, 16), jnp.float32)
    x2q = x2.astype(jnp.bfloat16).astype(jnp.float32)
    w2q = raw2[0]["w"].astype(jnp.bfloat16).astype(jnp.float32)
    got2 = conv_block(x2.astype(jnp.bfloat16), prep2[0], n_out=n2[0],
                      fused_norm=True)
    ref2 = _ref_instnorm_leaky(_ref_conv(x2q, w2q, raw2[0]["b"]))
    err2 = float(jnp.max(jnp.abs(got2.astype(jnp.float32) - ref2)))
    assert err2 < 5e-2, f"conv+instnorm+leaky mismatch: {err2}"

    # --- full encoder -------------------------------------------------------
    params_raw = init_encoder_raw(kp, inp_channels=3)
    params, n_outs = prep_params(params_raw)

    # Spatial 128 is the smallest size surviving 7 stride-2 convolutions
    # (128 -> 64 -> 32 -> 16 -> 8 -> 4 -> 2 -> 1); batch kept small.
    B, S = 2, 128
    image = jax.random.normal(ki, (B, 3, S, S), jnp.float32)

    out = encoder_forward(params, image, n_outs)
    out = jax.block_until_ready(out)

    assert out.shape == (B, FB, 1, 1), out.shape
    assert bool(jnp.all(jnp.isfinite(out)))
    print("KERNEL_OK")
</pallas_src>

<mosaic_0001>
module attributes {stable_mosaic.version = 11 : i64} {
  func.func @_conv_bias_act_kernel(%arg0: i32, %arg1: i32, %arg2: memref<128x128xbf16, #tpu.memory_space<vmem>>, %arg3: memref<128x128xbf16, #tpu.memory_space<vmem>>, %arg4: memref<1x128xf32, #tpu.memory_space<vmem>>, %arg5: memref<128x128xbf16, #tpu.memory_space<vmem>>) attributes {dimension_semantics = [#tpu.dimension_semantics<parallel>, #tpu.dimension_semantics<parallel>], iteration_bounds = array<i64: 1, 1>, scalar_prefetch = 0 : i64, scratch_operands = 0 : i64, tpu.core_type = #tpu.core_type<tc>, window_params = [{transform_indices = @transform_0, window_bounds = array<i64: 128, 128>}, {transform_indices = @transform_1, window_bounds = array<i64: 128, 128>}, {transform_indices = @transform_2, window_bounds = array<i64: 1, 128>}, {transform_indices = @transform_3, window_bounds = array<i64: 128, 128>}]} {
    %c0 = arith.constant 0 : index
    %c0_0 = arith.constant 0 : index
    %0 = vector.load %arg2[%c0, %c0_0] : memref<128x128xbf16, #tpu.memory_space<vmem>>, vector<128x128xbf16>
    %c0_1 = arith.constant 0 : index
    %c0_2 = arith.constant 0 : index
    %1 = vector.load %arg3[%c0_1, %c0_2] : memref<128x128xbf16, #tpu.memory_space<vmem>>, vector<128x128xbf16>
    %cst = arith.constant dense<0.000000e+00> : vector<128x128xf32>
    %2 = tpu.matmul %0, %1, %cst {dimension_numbers = #tpu.dot_dimension_numbers<[1], [0], [0], [1], [0, 0, 1, 1], [], []>} : vector<128x128xbf16>, vector<128x128xbf16>, vector<128x128xf32> -> vector<128x128xf32>
    %c0_3 = arith.constant 0 : index
    %c0_4 = arith.constant 0 : index
    %3 = vector.load %arg4[%c0_3, %c0_4] : memref<1x128xf32, #tpu.memory_space<vmem>>, vector<1x128xf32>
    %4 = vector.broadcast %3 : vector<1x128xf32> to vector<128x128xf32>
    %5 = arith.addf %2, %4 : vector<128x128xf32>
    %cst_5 = arith.constant 0.000000e+00 : f32
    %6 = vector.broadcast %cst_5 : f32 to vector<128x128xf32>
    %7 = arith.cmpf oge, %5, %6 : vector<128x128xf32>
    %cst_6 = arith.constant 2.000000e-01 : f32
    %8 = vector.broadcast %cst_6 : f32 to vector<128x128xf32>
    %9 = arith.mulf %8, %5 : vector<128x128xf32>
    %10 = arith.select %7, %5, %9 : vector<128x128xi1>, vector<128x128xf32>
    %11 = arith.truncf %10 : vector<128x128xf32> to vector<128x128xbf16>
    %c0_7 = arith.constant 0 : index
    %c0_8 = arith.constant 0 : index
    %12 = vector.load %arg5[%c0_7, %c0_8] : memref<128x128xbf16, #tpu.memory_space<vmem>>, vector<128x128xbf16>
    tpu.vector_store %arg5[%c0_7, %c0_8], %11 {strides = array<i32>} : memref<128x128xbf16, #tpu.memory_space<vmem>>, vector<128x128xbf16>,
    return
  }
  func.func @transform_0(%arg0: i32, %arg1: i32) -> (i32, i32) {
    %c0_i32 = arith.constant 0 : i32
    %c0_i32_0 = arith.constant 0 : i32
    return %arg0, %c0_i32 : i32, i32
  }
  func.func @transform_1(%arg0: i32, %arg1: i32) -> (i32, i32) {
    %c0_i32 = arith.constant 0 : i32
    %c0_i32_0 = arith.constant 0 : i32
    return %c0_i32, %arg1 : i32, i32
  }
  func.func @transform_2(%arg0: i32, %arg1: i32) -> (i32, i32) {
    %c0_i32 = arith.constant 0 : i32
    %c0_i32_0 = arith.constant 0 : i32
    return %c0_i32, %arg1 : i32, i32
  }
  func.func @transform_3(%arg0: i32, %arg1: i32) -> (i32, i32) {
    %c0_i32 = arith.constant 0 : i32
    return %arg0, %arg1 : i32, i32
  }
}

</mosaic_0001>

<llo_original>
// kernel: tpu_custom_call.1
$region0: #{tpu_custom_call.1}
  #allocation0 [shape = 'u32[]', space=smem, size = 0x4, offset = 0x4, fixed_abs, tag = 'smem constant byte address 0x4 - core index']
  #allocation1 [shape = 'u32[144,128]{1,0:T(1,128)}', space=vmem, size = 0x12000, scoped, tag = 'internal scratch']
  %s0 = inlined_call_operand.hbm [shape: bf16[128,128], index: 0, kind: input, shape index: {}]
  %s1 = inlined_call_operand.hbm [shape: bf16[128,128], index: 1, kind: input, shape index: {}]
  %s2 = inlined_call_operand.vmem [shape: f32[1,128], index: 2, kind: input, shape index: {}]
  %s3 = inlined_call_operand.hbm [shape: bf16[128,128], index: 3, kind: output, shape index: {}]
  %s4 = sld [smem:[#allocation0]]
  $region30: #{tpu_custom_call.1} parent=0
    _
  %s6 = ssub.s32 1, %s4
  %s7 = scalar_select 0, %s6, %s4
  $region1: #{tpu_custom_call.1} parent=0
    #allocation2 [shape = 'u8[32768]{0}', space=vmem, size = 0x8000, scoped, tag = 'input window, operand 0, single buffered']
    #allocation3 [shape = 's32[1]{0}', space=sflag, size = 0x4, scoped, tag = 'scoped memory for tpu_custom_call.1']
    #allocation4 [shape = 's32[1]{0}', space=sflag, size = 0x4, scoped, tag = 'scoped memory for tpu_custom_call.1']
    #allocation5 [shape = 'u8[32768]{0}', space=vmem, size = 0x8000, scoped, tag = 'input window, operand 1, single buffered']
    #allocation6 [shape = 's32[1]{0}', space=sflag, size = 0x4, scoped, tag = 'scoped memory for tpu_custom_call.1']
    #allocation7 [shape = 'u8[32768]{0}', space=vmem, size = 0x8000, scoped, tag = 'output window, operand 0, single buffered']
    %8 = vsyncpa [#allocation3], 0
    %9 = vsyncpa [#allocation6], 0
    %10 = vsyncpa [#allocation4], 0
    // Predicated region
    $region2: #{tpu_custom_call.1} parent=1 // pred_check
      _
    $region3: #{tpu_custom_call.1} parent=1 // pred_check_branch
      %12 = sbr.rel (0) target = $region5
    $region4: #{tpu_custom_call.1} parent=1 // pred_region
      %s14 = ssub.s32 1024, 1024
      %15 = vsyncadd [#allocation3], %s14
      %s16 = sshll.u32 [#allocation2], 4
      %s17 = int_to_ptr.vmem [resolvable:$true] %s16
      %22 = dma.hbm_to_vmem [thread:$0]  %s0, 1024, %s17, [#allocation3], 64, 64, 4
    $region5: #{tpu_custom_call.1} parent=1 // pred_fallthru
      _
    // Predicated region
    $region6: #{tpu_custom_call.1} parent=1 // pred_check
      _
    $region7: #{tpu_custom_call.1} parent=1 // pred_check_branch
      %24 = sbr.rel (0) target = $region9
    $region8: #{tpu_custom_call.1} parent=1 // pred_region
      %s26 = ssub.s32 1024, 1024
      %27 = vsyncadd [#allocation6], %s26
      %s28 = sshll.u32 [#allocation5], 4
      %s29 = int_to_ptr.vmem [resolvable:$true] %s28
      %34 = dma.hbm_to_vmem [thread:$0]  %s1, 1024, %s29, [#allocation6], 64, 64, 4
    $region9: #{tpu_custom_call.1} parent=1 // pred_fallthru
      _
    // Predicated region
    $region10: #{tpu_custom_call.1} parent=1 // pred_check
      _
    $region11: #{tpu_custom_call.1} parent=1 // pred_check_branch
      %36 = sbr.rel (0) target = $region13
    $region12: #{tpu_custom_call.1} parent=1 // pred_region
      _
    $region13: #{tpu_custom_call.1} parent=1 // pred_fallthru
      _
    // Predicated region
    $region14: #{tpu_custom_call.1} parent=1 // pred_check
      _
    $region15: #{tpu_custom_call.1} parent=1 // pred_check_branch
      %38 = sbr.rel (0) target = $region17
    $region16: #{tpu_custom_call.1} parent=1 // pred_region
      %39 = dma.done [#allocation3], 1024
    $region17: #{tpu_custom_call.1} parent=1 // pred_fallthru
      _
    // Predicated region
    $region18: #{tpu_custom_call.1} parent=1 // pred_check
      _
    $region19: #{tpu_custom_call.1} parent=1 // pred_check_branch
      %41 = sbr.rel (0) target = $region21
    $region20: #{tpu_custom_call.1} parent=1 // pred_region
      %42 = dma.done [#allocation6], 1024
    $region21: #{tpu_custom_call.1} parent=1 // pred_fallthru
      _
    %v44 = vld [vmem:[#allocation2] sm:$0xf]
    %v45 = vld [vmem:[#allocation2 + $0x4] sm:$0xf]
    %v46 = vld [vmem:[#allocation2 + $0x8] sm:$0xf]
    %v47 = vld [vmem:[#allocation2 + $0xc] sm:$0xf]
    %v48 = vld [vmem:[#allocation2 + $0x10] sm:$0xf]
    %v49 = vld [vmem:[#allocation2 + $0x14] sm:$0xf]
    %v50 = vld [vmem:[#allocation2 + $0x18] sm:$0xf]
    %v51 = vld [vmem:[#allocation2 + $0x1c] sm:$0xf]
    %v52 = vld [vmem:[#allocation2 + $0x20] sm:$0xf]
    %v53 = vld [vmem:[#allocation2 + $0x24] sm:$0xf]
    %v54 = vld [vmem:[#allocation2 + $0x28] sm:$0xf]
    %v55 = vld [vmem:[#allocation2 + $0x2c] sm:$0xf]
    %v56 = vld [vmem:[#allocation2 + $0x30] sm:$0xf]
    %v57 = vld [vmem:[#allocation2 + $0x34] sm:$0xf]
    %v58 = vld [vmem:[#allocation2 + $0x38] sm:$0xf]
    %v59 = vld [vmem:[#allocation2 + $0x3c] sm:$0xf]
    %v60 = vld [vmem:[#allocation5] sm:$0xf]
    %v61 = vld [vmem:[#allocation5 + $0x4] sm:$0xf]
    %v62 = vld [vmem:[#allocation5 + $0x8] sm:$0xf]
    %v63 = vld [vmem:[#allocation5 + $0xc] sm:$0xf]
    %v64 = vld [vmem:[#allocation5 + $0x10] sm:$0xf]
    %v65 = vld [vmem:[#allocation5 + $0x14] sm:$0xf]
    %v66 = vld [vmem:[#allocation5 + $0x18] sm:$0xf]
    %v67 = vld [vmem:[#allocation5 + $0x1c] sm:$0xf]
    %v68 = vld [vmem:[#allocation5 + $0x20] sm:$0xf]
    %v69 = vld [vmem:[#allocation5 + $0x24] sm:$0xf]
    %v70 = vld [vmem:[#allocation5 + $0x28] sm:$0xf]
    %v71 = vld [vmem:[#allocation5 + $0x2c] sm:$0xf]
    %v72 = vld [vmem:[#allocation5 + $0x30] sm:$0xf]
    %v73 = vld [vmem:[#allocation5 + $0x34] sm:$0xf]
    %v74 = vld [vmem:[#allocation5 + $0x38] sm:$0xf]
    %v75 = vld [vmem:[#allocation5 + $0x3c] sm:$0xf]
    %v76 = vld [vmem:[%s2] sm:$0x1]
    %v78 = vlaneseq
    %v79 = vshrl.u32 %v78, 7
    %v80 = vsub.s32 0, %v79
    %v81 = vrot.slane %v76, %v80
    %v99 = vunpack.c.l.b16 %v44
    %v100 = vunpack.c.l.b16 %v45
    %v101 = vunpack.c.l.b16 %v46
    %v102 = vunpack.c.l.b16 %v47
    %v103 = vunpack.c.l.b16 %v48
    %v104 = vunpack.c.l.b16 %v49
    %v105 = vunpack.c.l.b16 %v50
    %v106 = vunpack.c.l.b16 %v51
    %v107 = vunpack.c.l.b16 %v52
    %v108 = vunpack.c.l.b16 %v53
    %v109 = vunpack.c.l.b16 %v54
    %v110 = vunpack.c.l.b16 %v55
    %v111 = vunpack.c.l.b16 %v56
    %v112 = vunpack.c.l.b16 %v57
    %v113 = vunpack.c.l.b16 %v58
    %v114 = vunpack.c.l.b16 %v59
    %v115 = vpack.c.b16 %v100, %v99
    %v116 = vpack.c.b16 %v102, %v101
    %v117 = vpack.c.b16 %v104, %v103
    %v118 = vpack.c.b16 %v106, %v105
    %v119 = vpack.c.b16 %v108, %v107
    %v120 = vpack.c.b16 %v110, %v109
    %v121 = vpack.c.b16 %v112, %v111
    %v122 = vpack.c.b16 %v114, %v113
    %v147 = vunpack.c.l.b16 %v60
    %v148 = vunpack.c.l.b16 %v61
    %v149 = vunpack.c.l.b16 %v62
    %v150 = vunpack.c.l.b16 %v63
    %v151 = vunpack.c.l.b16 %v64
    %v152 = vunpack.c.l.b16 %v65
    %v153 = vunpack.c.l.b16 %v66
    %v154 = vunpack.c.l.b16 %v67
    %v155 = vunpack.c.l.b16 %v68
    %v156 = vunpack.c.l.b16 %v69
    %v157 = vunpack.c.l.b16 %v70
    %v158 = vunpack.c.l.b16 %v71
    %v159 = vunpack.c.l.b16 %v72
    %v160 = vunpack.c.l.b16 %v73
    %v161 = vunpack.c.l.b16 %v74
    %v162 = vunpack.c.l.b16 %v75
    %v163 = vpack.c.b16 %v148, %v147
    %v164 = vpack.c.b16 %v150, %v149
    %v165 = vpack.c.b16 %v152, %v151
    %v166 = vpack.c.b16 %v154, %v153
    %v167 = vpack.c.b16 %v156, %v155
    %v168 = vpack.c.b16 %v158, %v157
    %v169 = vpack.c.b16 %v160, %v159
    %v170 = vpack.c.b16 %v162, %v161
    %179 = vmatprep.subr.bf16.mxu0 0
    %180 = vmatpush1.bf16.msra.mxu0 %v163
    %181 = vmatprep.subr.bf16.mxu0 0
    %182 = vmatpush1.bf16.msra.mxu0 %v164
    %183 = vmatprep.subr.bf16.mxu0 0
    %184 = vmatpush1.bf16.msra.mxu0 %v165
    %185 = vmatprep.subr.bf16.mxu0 0
    %186 = vmatpush1.bf16.msra.mxu0 %v166
    %187 = vmatprep.subr.bf16.mxu0 0
    %188 = vmatpush1.bf16.msra.mxu0 %v167
    %189 = vmatprep.subr.bf16.mxu0 0
    %190 = vmatpush1.bf16.msra.mxu0 %v168
    %191 = vmatprep.subr.bf16.mxu0 0
    %192 = vmatpush1.bf16.msra.mxu0 %v169
    %193 = vmatprep.subr.bf16.mxu0 0
    %194 = vmatpush1.bf16.msra.mxu0 %v170
    %195 = vmatprep.subr.bf16.mxu0 0
    %196 = vmatpush1.bf16.msra.mxu0 0
    %197 = vmatprep.subr.bf16.mxu0 0
    %198 = vmatpush1.bf16.msra.mxu0 0
    %199 = vmatprep.subr.bf16.mxu0 0
    %200 = vmatpush1.bf16.msra.mxu0 0
    %201 = vmatprep.subr.bf16.mxu0 0
    %202 = vmatpush1.bf16.msra.mxu0 0
    %203 = vmatprep.subr.bf16.mxu0 0
    %204 = vmatpush1.bf16.msra.mxu0 0
    %205 = vmatprep.subr.bf16.mxu0 0
    %206 = vmatpush1.bf16.msra.mxu0 0
    %207 = vmatprep.subr.bf16.mxu0 0
    %208 = vmatpush1.bf16.msra.mxu0 0
    %209 = vmatprep.subr.bf16.mxu0 0
    %210 = vmatpush1.bf16.msra.mxu0 0
    %211 = vmatprep.mubr.bf16.mxu0 0
    %212 = vmatmul.mubr.bf16.gmra.mrb[0].mxu0 %v115
    %v213 = vpop.f32.mrb[0].mxu0
    %v214 = vadd.f32 %v81, %v213
    %v215 = vpop.f32.mrb[0].mxu0
    %v216 = vpop.f32.mrb[0].mxu0
    %v217 = vadd.f32 %v81, %v216
    %v218 = vpop.f32.mrb[0].mxu0
    %219 = vmatprep.mubr.bf16.mxu0 0
    %220 = vmatmul.mubr.bf16.gmra.mrb[0].mxu0 %v116
    %v221 = vpop.f32.mrb[0].mxu0
    %v222 = vadd.f32 %v81, %v221
    %v223 = vpop.f32.mrb[0].mxu0
    %v224 = vpop.f32.mrb[0].mxu0
    %v225 = vadd.f32 %v81, %v224
    %v226 = vpop.f32.mrb[0].mxu0
    %227 = vmatprep.mubr.bf16.mxu0 0
    %228 = vmatmul.mubr.bf16.gmra.mrb[0].mxu0 %v117
    %v229 = vpop.f32.mrb[0].mxu0
    %v230 = vadd.f32 %v81, %v229
    %v231 = vpop.f32.mrb[0].mxu0
    %v232 = vpop.f32.mrb[0].mxu0
    %v233 = vadd.f32 %v81, %v232
    %v234 = vpop.f32.mrb[0].mxu0
    %235 = vmatprep.mubr.bf16.mxu0 0
    %236 = vmatmul.mubr.bf16.gmra.mrb[0].mxu0 %v118
    %v237 = vpop.f32.mrb[0].mxu0
    %v238 = vadd.f32 %v81, %v237
    %v239 = vpop.f32.mrb[0].mxu0
    %v240 = vpop.f32.mrb[0].mxu0
    %v241 = vadd.f32 %v81, %v240
    %v242 = vpop.f32.mrb[0].mxu0
    %243 = vmatprep.mubr.bf16.mxu0 0
    %244 = vmatmul.mubr.bf16.gmra.mrb[0].mxu0 %v119
    %v245 = vpop.f32.mrb[0].mxu0
    %v246 = vadd.f32 %v81, %v245
    %v247 = vpop.f32.mrb[0].mxu0
    %v248 = vpop.f32.mrb[0].mxu0
    %v249 = vadd.f32 %v81, %v248
    %v250 = vpop.f32.mrb[0].mxu0
    %251 = vmatprep.mubr.bf16.mxu0 0
    %252 = vmatmul.mubr.bf16.gmra.mrb[0].mxu0 %v120
    %v253 = vpop.f32.mrb[0].mxu0
    %v254 = vadd.f32 %v81, %v253
    %v255 = vpop.f32.mrb[0].mxu0
    %v256 = vpop.f32.mrb[0].mxu0
    %v257 = vadd.f32 %v81, %v256
    %v258 = vpop.f32.mrb[0].mxu0
    %259 = vmatprep.mubr.bf16.mxu0 0
    %260 = vmatmul.mubr.bf16.gmra.mrb[0].mxu0 %v121
    %v261 = vpop.f32.mrb[0].mxu0
    %v262 = vadd.f32 %v81, %v261
    %v263 = vpop.f32.mrb[0].mxu0
    %v264 = vpop.f32.mrb[0].mxu0
    %v265 = vadd.f32 %v81, %v264
    %v266 = vpop.f32.mrb[0].mxu0
    %267 = vmatprep.mubr.bf16.mxu0 0
    %268 = vmatmul.mubr.bf16.gmra.mrb[0].mxu0 %v122
    %v269 = vpop.f32.mrb[0].mxu0
    %v270 = vadd.f32 %v81, %v269
    %v271 = vpop.f32.mrb[0].mxu0
    %v272 = vpop.f32.mrb[0].mxu0
    %v273 = vadd.f32 %v81, %v272
    %v274 = vpop.f32.mrb[0].mxu0
    %275 = vdwg.mxu0
    %vm276 = vcmp.ge.f32.partialorder %v214, 0.0
    %vm277 = vcmp.ge.f32.partialorder %v217, 0.0
    %vm278 = vcmp.ge.f32.partialorder %v222, 0.0
    %vm279 = vcmp.ge.f32.partialorder %v225, 0.0
    %vm280 = vcmp.ge.f32.partialorder %v230, 0.0
    %vm281 = vcmp.ge.f32.partialorder %v233, 0.0
    %vm282 = vcmp.ge.f32.partialorder %v238, 0.0
    %vm283 = vcmp.ge.f32.partialorder %v241, 0.0
    %vm284 = vcmp.ge.f32.partialorder %v246, 0.0
    %vm285 = vcmp.ge.f32.partialorder %v249, 0.0
    %vm286 = vcmp.ge.f32.partialorder %v254, 0.0
    %vm287 = vcmp.ge.f32.partialorder %v257, 0.0
    %vm288 = vcmp.ge.f32.partialorder %v262, 0.0
    %vm289 = vcmp.ge.f32.partialorder %v265, 0.0
    %vm290 = vcmp.ge.f32.partialorder %v270, 0.0
    %vm291 = vcmp.ge.f32.partialorder %v273, 0.0
    %v292 = vmul.f32 %v214, 0.2
    %v293 = vmul.f32 %v217, 0.2
    %v294 = vmul.f32 %v222, 0.2
    %v295 = vmul.f32 %v225, 0.2
    %v296 = vmul.f32 %v230, 0.2
    %v297 = vmul.f32 %v233, 0.2
    %v298 = vmul.f32 %v238, 0.2
    %v299 = vmul.f32 %v241, 0.2
    %v300 = vmul.f32 %v246, 0.2
    %v301 = vmul.f32 %v249, 0.2
    %v302 = vmul.f32 %v254, 0.2
    %v303 = vmul.f32 %v257, 0.2
    %v304 = vmul.f32 %v262, 0.2
    %v305 = vmul.f32 %v265, 0.2
    %v306 = vmul.f32 %v270, 0.2
    %v307 = vmul.f32 %v273, 0.2
    %v308 = vsel %vm276, %v214, %v292
    %v309 = vsel %vm277, %v217, %v293
    %v310 = vsel %vm278, %v222, %v294
    %v311 = vsel %vm279, %v225, %v295
    %v312 = vsel %vm280, %v230, %v296
    %v313 = vsel %vm281, %v233, %v297
    %v314 = vsel %vm282, %v238, %v298
    %v315 = vsel %vm283, %v241, %v299
    %v316 = vsel %vm284, %v246, %v300
    %v317 = vsel %vm285, %v249, %v301
    %v318 = vsel %vm286, %v254, %v302
    %v319 = vsel %vm287, %v257, %v303
    %v320 = vsel %vm288, %v262, %v304
    %v321 = vsel %vm289, %v265, %v305
    %v322 = vsel %vm290, %v270, %v306
    %v323 = vsel %vm291, %v273, %v307
    %v324 = vpack.c.bf16 %v309, %v308
    %v325 = vpack.c.bf16 %v311, %v310
    %v326 = vpack.c.bf16 %v313, %v312
    %v327 = vpack.c.bf16 %v315, %v314
    %v328 = vpack.c.bf16 %v317, %v316
    %v329 = vpack.c.bf16 %v319, %v318
    %v330 = vpack.c.bf16 %v321, %v320
    %v331 = vpack.c.bf16 %v323, %v322
    %v340 = vunpack.c.l.b16 %v324
    %v341 = vunpack.c.h.b16 %v324
    %v342 = vunpack.c.l.b16 %v325
    %v343 = vunpack.c.h.b16 %v325
    %v344 = vunpack.c.l.b16 %v326
    %v345 = vunpack.c.h.b16 %v326
    %v346 = vunpack.c.l.b16 %v327
    %v347 = vunpack.c.h.b16 %v327
    %v348 = vunpack.c.l.b16 %v328
    %v349 = vunpack.c.h.b16 %v328
    %v350 = vunpack.c.l.b16 %v329
    %v351 = vunpack.c.h.b16 %v329
    %v352 = vunpack.c.l.b16 %v330
    %v353 = vunpack.c.h.b16 %v330
    %v354 = vunpack.c.l.b16 %v331
    %v355 = vunpack.c.h.b16 %v331
    %v356 = vpack.c.b16 %v340, %v340
    %v357 = vpack.c.b16 %v341, %v341
    %v358 = vpack.c.b16 %v342, %v342
    %v359 = vpack.c.b16 %v343, %v343
    %v360 = vpack.c.b16 %v344, %v344
    %v361 = vpack.c.b16 %v345, %v345
    %v362 = vpack.c.b16 %v346, %v346
    %v363 = vpack.c.b16 %v347, %v347
    %v364 = vpack.c.b16 %v348, %v348
    %v365 = vpack.c.b16 %v349, %v349
    %v366 = vpack.c.b16 %v350, %v350
    %v367 = vpack.c.b16 %v351, %v351
    %v368 = vpack.c.b16 %v352, %v352
    %v369 = vpack.c.b16 %v353, %v353
    %v370 = vpack.c.b16 %v354, %v354
    %v371 = vpack.c.b16 %v355, %v355
    %388 = vst [vmem:[#allocation7] sm:$0xf] %v356
    %389 = vst [vmem:[#allocation7 + $0x4] sm:$0xf] %v357
    %390 = vst [vmem:[#allocation7 + $0x8] sm:$0xf] %v358
    %391 = vst [vmem:[#allocation7 + $0xc] sm:$0xf] %v359
    %392 = vst [vmem:[#allocation7 + $0x10] sm:$0xf] %v360
    %393 = vst [vmem:[#allocation7 + $0x14] sm:$0xf] %v361
    %394 = vst [vmem:[#allocation7 + $0x18] sm:$0xf] %v362
    %395 = vst [vmem:[#allocation7 + $0x1c] sm:$0xf] %v363
    %396 = vst [vmem:[#allocation7 + $0x20] sm:$0xf] %v364
    %397 = vst [vmem:[#allocation7 + $0x24] sm:$0xf] %v365
    %398 = vst [vmem:[#allocation7 + $0x28] sm:$0xf] %v366
    %399 = vst [vmem:[#allocation7 + $0x2c] sm:$0xf] %v367
    %400 = vst [vmem:[#allocation7 + $0x30] sm:$0xf] %v368
    %401 = vst [vmem:[#allocation7 + $0x34] sm:$0xf] %v369
    %402 = vst [vmem:[#allocation7 + $0x38] sm:$0xf] %v370
    %403 = vst [vmem:[#allocation7 + $0x3c] sm:$0xf] %v371
    // Predicated region
    $region22: #{tpu_custom_call.1} parent=1 // pred_check
      _
    $region23: #{tpu_custom_call.1} parent=1 // pred_check_branch
      %405 = sbr.rel (0) target = $region25
    $region24: #{tpu_custom_call.1} parent=1 // pred_region
      %s407 = ssub.s32 1024, 1024
      %408 = vsyncadd [#allocation4], %s407
      %s409 = sshll.u32 [#allocation7], 4
      %s410 = int_to_ptr.vmem [resolvable:$true] %s409
      %415 = dma.vmem_to_hbm [thread:$0]  %s410, 1024, %s3, [#allocation4], 64, 64, 4
    $region25: #{tpu_custom_call.1} parent=1 // pred_fallthru
      _
    // Predicated region
    $region26: #{tpu_custom_call.1} parent=1 // pred_check
      _
    $region27: #{tpu_custom_call.1} parent=1 // pred_check_branch
      %417 = sbr.rel (0) target = $region29
    $region28: #{tpu_custom_call.1} parent=1 // pred_region
      %418 = dma.done [#allocation4], 1024
    $region29: #{tpu_custom_call.1} parent=1 // pred_fallthru
      _
    %419 = vsyncpa [#allocation3], 1
    %420 = vsyncpa [#allocation6], 1
    %421 = vsyncpa [#allocation4], 1

</llo_original>
